<compile_context>
chip_gen: v5e
topology: v5e:2x2
jax: 0.10.0
libtpu: 0.0.40
codegen_flags: <defaults>
</compile_context>

<pallas_src>
import functools

import jax
import jax.numpy as jnp
from jax import lax
from jax.experimental import pallas as pl
from jax.experimental.pallas import tpu as pltpu

_LANES = 128
_CHUNK_SUBLANES = 8   # inner-loop granularity: (8, 128) = 1 f32 vreg per channel


def _cdiv(a, b):
    return (a + b - 1) // b


def _round_down(x, m):
    return (x // m) * m


def _round_up(x, m):
    return ((x + m - 1) // m) * m


def _regression_kernel(anchors_ref, bbox_ref, ldm_ref, boxes_ref, ldm_out_ref,
                       *, img_w, img_h, chunk, n_chunks, std_box, std_ldm):
    # Block shapes: anchors/bbox (1, 4, tsub, 128), ldm (1, 10, tsub, 128).
    # TODO(synk): self.mean is allocated in the PyTorch module but never used in
    # forward(), so it is intentionally omitted here.
    w_f = jnp.float32(img_w)
    h_f = jnp.float32(img_h)
    sbx, sby, sbw, sbh = (float(s) for s in std_box)
    sld = float(std_ldm)

    def body(i, carry):
        r = pl.multiple_of(i * chunk, chunk)
        sl = pl.ds(r, chunk)

        # Per-channel reads: every intermediate below is a (chunk, 128) tile
        # (1 vreg at chunk=8), keeping the live set far under the 64-vreg file
        # no matter how large the outer tile (tsub) is.
        x1a = anchors_ref[0, 0, sl, :].astype(jnp.float32)
        y1a = anchors_ref[0, 1, sl, :].astype(jnp.float32)
        x2a = anchors_ref[0, 2, sl, :].astype(jnp.float32)
        y2a = anchors_ref[0, 3, sl, :].astype(jnp.float32)

        widths = x2a - x1a
        heights = y2a - y1a
        ctr_x = x1a + 0.5 * widths
        ctr_y = y1a + 0.5 * heights

        # Hoisted scale*size products, reused across dx/dy and all 5 landmark points.
        swb = sbx * widths
        shb = sby * heights
        swl = sld * widths
        shl = sld * heights

        dx = bbox_ref[0, 0, sl, :].astype(jnp.float32)
        dy = bbox_ref[0, 1, sl, :].astype(jnp.float32)
        dw = bbox_ref[0, 2, sl, :].astype(jnp.float32)
        dh = bbox_ref[0, 3, sl, :].astype(jnp.float32)

        pred_ctr_x = ctr_x + dx * swb
        pred_ctr_y = ctr_y + dy * shb
        half_w = 0.5 * jnp.exp(dw * sbw) * widths     # exp -> EUP slot (free)
        half_h = 0.5 * jnp.exp(dh * sbh) * heights

        boxes_ref[0, 0, sl, :] = jnp.clip(pred_ctr_x - half_w, 0.0, w_f)
        boxes_ref[0, 1, sl, :] = jnp.clip(pred_ctr_y - half_h, 0.0, h_f)
        boxes_ref[0, 2, sl, :] = jnp.clip(pred_ctr_x + half_w, 0.0, w_f)
        boxes_ref[0, 3, sl, :] = jnp.clip(pred_ctr_y + half_h, 0.0, h_f)

        # Landmarks: 5 (x, y) points.
        for p in range(5):
            lx = ldm_ref[0, 2 * p, sl, :].astype(jnp.float32)
            ly = ldm_ref[0, 2 * p + 1, sl, :].astype(jnp.float32)
            ldm_out_ref[0, 2 * p, sl, :] = jnp.clip(ctr_x + lx * swl, 0.0, w_f)
            ldm_out_ref[0, 2 * p + 1, sl, :] = jnp.clip(ctr_y + ly * shl, 0.0, h_f)
        return carry

    lax.fori_loop(0, n_chunks, body, 0)


def regression_transform_channel_minor(anchors_cn, bbox_cn, ldm_cn, *,
                                       img_w, img_h, block_anchors=32768,
                                       std_box=(0.1, 0.1, 0.2, 0.2), std_ldm=0.1,
                                       trim=True):
    """Transpose-free fast path.

    anchors_cn: (B, 4, N), bbox_cn: (B, 4, N), ldm_cn: (B, 10, N).
    Returns (pred_boxes (B, 4, N), pred_landmarks (B, 10, N)) in float32.
    When N % 128 == 0 this path does zero wrapper copies (no pad, no slice).
    Set trim=False to receive the 128-padded layout (skips the trailing slice).
    Deltas may be bf16; they are DMA'd as-is and cast to f32 inside the kernel.
    """
    B, ca, N = anchors_cn.shape
    assert ca == 4
    assert bbox_cn.shape == (B, 4, N)
    assert ldm_cn.shape == (B, 10, N)

    n_rows = _cdiv(N, _LANES)
    n_pad = n_rows * _LANES

    # Tile selection.  Default cap (block_anchors=32768 -> tsub=256) keeps the
    # double-buffered working set at ~8 MiB (safe vs. the v5e 16 MiB scoped default);
    # v7x/v6e callers can pass block_anchors=65536 (tsub=512) and the vmem limit is
    # raised automatically below.  No row round-up: the grid uses cdiv and Pallas
    # masks the partial last block.
    cap = max(8, _round_down(max(block_anchors // _LANES, 8), 8))
    if n_rows <= 8:
        tsub = n_rows                                  # block = full sublane extent
    else:
        tsub = max(8, min(cap, _round_down(n_rows, 8)))
        if B == 1:
            # Keep >= 2 row-steps so both v7x TensorCores get work at batch 1.
            tsub = min(tsub, max(8, _round_up(_cdiv(n_rows, 2), 8)))

    if tsub <= 8:
        chunk, n_chunks = tsub, 1
    else:
        chunk, n_chunks = _CHUNK_SUBLANES, tsub // _CHUNK_SUBLANES

    def prep(x):
        if n_pad != N:                                  # only pad when unavoidable
            x = jnp.pad(x, ((0, 0), (0, 0), (0, n_pad - N)))
        return x.reshape(B, x.shape[1], n_rows, _LANES)  # free (metadata) reshape

    in_bytes_per_anchor = (4 * anchors_cn.dtype.itemsize
                           + 4 * bbox_cn.dtype.itemsize
                           + 10 * ldm_cn.dtype.itemsize)
    out_bytes_per_anchor = 14 * 4
    step_bytes = (in_bytes_per_anchor + out_bytes_per_anchor) * tsub * _LANES
    vmem_limit = None
    if 2 * step_bytes > 12 * 1024 * 1024:               # beyond v5e's default headroom
        vmem_limit = int(min(2 * step_bytes + (4 << 20), 96 << 20))

    kernel = functools.partial(
        _regression_kernel,
        img_w=float(img_w), img_h=float(img_h),
        chunk=chunk, n_chunks=n_chunks,
        std_box=tuple(float(s) for s in std_box), std_ldm=float(std_ldm))

    grid = (B, _cdiv(n_rows, tsub))
    idx = lambda b, n: (b, 0, n, 0)

    boxes_r, ldm_r = pl.pallas_call(
        kernel,
        out_shape=(
            jax.ShapeDtypeStruct((B, 4, n_rows, _LANES), jnp.float32),
            jax.ShapeDtypeStruct((B, 10, n_rows, _LANES), jnp.float32),
        ),
        grid_spec=pltpu.PrefetchScalarGridSpec(
            num_scalar_prefetch=0,
            grid=grid,
            in_specs=[
                pl.BlockSpec((1, 4, tsub, _LANES), idx),
                pl.BlockSpec((1, 4, tsub, _LANES), idx),
                pl.BlockSpec((1, 10, tsub, _LANES), idx),
            ],
            out_specs=[
                pl.BlockSpec((1, 4, tsub, _LANES), idx),
                pl.BlockSpec((1, 10, tsub, _LANES), idx),
            ],
        ),
        compiler_params=pltpu.CompilerParams(
            dimension_semantics=("parallel", "parallel"),
            vmem_limit_bytes=vmem_limit),
        cost_estimate=pl.CostEstimate(
            flops=60 * B * n_pad,
            transcendentals=2 * B * n_pad,
            bytes_accessed=(in_bytes_per_anchor + out_bytes_per_anchor) * B * n_pad),
    )(prep(anchors_cn), prep(bbox_cn), prep(ldm_cn))

    boxes_cn = boxes_r.reshape(B, 4, n_pad)              # free reshape
    ldm_out_cn = ldm_r.reshape(B, 10, n_pad)
    if trim and n_pad != N:
        boxes_cn = boxes_cn[:, :, :N]
        ldm_out_cn = ldm_out_cn[:, :, :N]
    return boxes_cn, ldm_out_cn


def regression_transform(anchors, bbox_deltas, ldm_deltas, img, *,
                         block_anchors=32768,
                         std_box=(0.1, 0.1, 0.2, 0.2), std_ldm=0.1):
    """PyTorch-compatible wrapper.

    anchors: (B, N, 4), bbox_deltas: (B, N, 4), ldm_deltas: (B, N, 10), img: (B, C, H, W).
    Returns (pred_boxes (B, N, 4), pred_landmarks (B, N, 10)).

    Note: the (B, N, C) <-> (B, C, N) relayouts below are boundary cost only and
    dominate this memory-bound op; callers that can keep data channel-minor should
    call `regression_transform_channel_minor` directly (zero transpose traffic).
    """
    B, N, _ = anchors.shape
    _, _, H, W = img.shape

    anchors_t = jnp.transpose(anchors, (0, 2, 1))
    bbox_t = jnp.transpose(bbox_deltas, (0, 2, 1))
    ldm_t = jnp.transpose(ldm_deltas, (0, 2, 1))

    boxes_cn, ldm_cn = regression_transform_channel_minor(
        anchors_t, bbox_t, ldm_t, img_w=W, img_h=H,
        block_anchors=block_anchors, std_box=std_box, std_ldm=std_ldm)

    pred_boxes = jnp.transpose(boxes_cn, (0, 2, 1))
    pred_landmarks = jnp.transpose(ldm_cn, (0, 2, 1))
    return pred_boxes, pred_landmarks


def _reference(anchors, bbox_deltas, ldm_deltas, img):
    # Pure-JAX reference mirroring the PyTorch forward, for verification.
    _, _, H, W = img.shape
    widths = anchors[:, :, 2] - anchors[:, :, 0]
    heights = anchors[:, :, 3] - anchors[:, :, 1]
    ctr_x = anchors[:, :, 0] + 0.5 * widths
    ctr_y = anchors[:, :, 1] + 0.5 * heights
    std_box = jnp.array([0.1, 0.1, 0.2, 0.2], jnp.float32)
    bbox_deltas = bbox_deltas * std_box
    ldm_deltas = ldm_deltas * 0.1
    pred_ctr_x = ctr_x + bbox_deltas[:, :, 0] * widths
    pred_ctr_y = ctr_y + bbox_deltas[:, :, 1] * heights
    pred_w = jnp.exp(bbox_deltas[:, :, 2]) * widths
    pred_h = jnp.exp(bbox_deltas[:, :, 3]) * heights
    boxes = jnp.stack([pred_ctr_x - 0.5 * pred_w, pred_ctr_y - 0.5 * pred_h,
                       pred_ctr_x + 0.5 * pred_w, pred_ctr_y + 0.5 * pred_h], axis=2)
    pts = []
    for p in range(5):
        pts.append(ctr_x + ldm_deltas[:, :, 2 * p] * widths)
        pts.append(ctr_y + ldm_deltas[:, :, 2 * p + 1] * heights)
    ldm = jnp.stack(pts, axis=2)
    boxes = boxes.at[:, :, ::2].set(jnp.clip(boxes[:, :, ::2], 0, W))
    boxes = boxes.at[:, :, 1::2].set(jnp.clip(boxes[:, :, 1::2], 0, H))
    ldm = ldm.at[:, :, ::2].set(jnp.clip(ldm[:, :, ::2], 0, W))
    ldm = ldm.at[:, :, 1::2].set(jnp.clip(ldm[:, :, 1::2], 0, H))
    return boxes, ldm


if __name__ == "__main__":
    key = jax.random.PRNGKey(0)
    k1, k2, k3, k4 = jax.random.split(key, 4)

    B, N = 2, 1000          # N NOT a multiple of 128: exercises lane pad + masked tail
    C, H, W = 3, 16, 16

    # Anchors as valid (x1, y1, x2, y2) boxes within the image.
    x1y1 = jax.random.uniform(k1, (B, N, 2), jnp.float32, 0.0, 8.0)
    wh = jax.random.uniform(k2, (B, N, 2), jnp.float32, 1.0, 8.0)
    anchors = jnp.concatenate([x1y1, x1y1 + wh], axis=2)

    bbox_deltas = jax.random.normal(k3, (B, N, 4), jnp.float32)
    ldm_deltas = jax.random.normal(k4, (B, N, 10), jnp.float32)
    img = jnp.zeros((B, C, H, W), jnp.float32)

    # 1) PyTorch-layout wrapper path.
    boxes, landmarks = regression_transform(anchors, bbox_deltas, ldm_deltas, img)
    boxes = jax.block_until_ready(boxes)
    landmarks = jax.block_until_ready(landmarks)

    ref_boxes, ref_ldm = _reference(anchors, bbox_deltas, ldm_deltas, img)
    assert boxes.shape == (B, N, 4) and landmarks.shape == (B, N, 10)
    assert jnp.allclose(boxes, ref_boxes, atol=1e-5, rtol=1e-5)
    assert jnp.allclose(landmarks, ref_ldm, atol=1e-5, rtol=1e-5)

    # 2) Channel-minor fast path (N multiple of 128 -> no pad, no slice, no transpose
    #    inside the entry point; also exercises a block equal to the full row extent).
    N2 = 512
    anchors2 = jnp.transpose(anchors[:1, :N2], (0, 2, 1))
    bbox2 = jnp.transpose(bbox_deltas[:1, :N2], (0, 2, 1))
    ldm2 = jnp.transpose(ldm_deltas[:1, :N2], (0, 2, 1))
    boxes2, ldm_out2 = regression_transform_channel_minor(
        anchors2, bbox2, ldm2, img_w=W, img_h=H)
    boxes2 = jax.block_until_ready(boxes2)
    ldm_out2 = jax.block_until_ready(ldm_out2)

    rb2, rl2 = _reference(anchors[:1, :N2], bbox_deltas[:1, :N2],
                          ldm_deltas[:1, :N2], img[:1])
    assert jnp.allclose(jnp.transpose(boxes2, (0, 2, 1)), rb2, atol=1e-5, rtol=1e-5)
    assert jnp.allclose(jnp.transpose(ldm_out2, (0, 2, 1)), rl2, atol=1e-5, rtol=1e-5)

    print("KERNEL_OK")
</pallas_src>

<mosaic_0001>
module attributes {stable_mosaic.version = 11 : i64} {
  func.func @_regression_kernel(%arg0: i32, %arg1: i32, %arg2: memref<1x4x8x128xf32, #tpu.memory_space<vmem>>, %arg3: memref<1x4x8x128xf32, #tpu.memory_space<vmem>>, %arg4: memref<1x10x8x128xf32, #tpu.memory_space<vmem>>, %arg5: memref<1x4x8x128xf32, #tpu.memory_space<vmem>>, %arg6: memref<1x10x8x128xf32, #tpu.memory_space<vmem>>) attributes {dimension_semantics = [#tpu.dimension_semantics<parallel>, #tpu.dimension_semantics<parallel>], iteration_bounds = array<i64: 2, 1>, scalar_prefetch = 0 : i64, scratch_operands = 0 : i64, tpu.core_type = #tpu.core_type<tc>, window_params = [{transform_indices = @transform_0, window_bounds = array<i64: 1, 4, 8, 128>}, {transform_indices = @transform_1, window_bounds = array<i64: 1, 4, 8, 128>}, {transform_indices = @transform_2, window_bounds = array<i64: 1, 10, 8, 128>}, {transform_indices = @transform_3, window_bounds = array<i64: 1, 4, 8, 128>}, {transform_indices = @transform_4, window_bounds = array<i64: 1, 10, 8, 128>}]} {
    %cst = arith.constant 1.600000e+01 : f32
    %cst_0 = arith.constant 1.600000e+01 : f32
    %c0_i32 = arith.constant 0 : i32
    %c8_i32 = arith.constant 8 : i32
    %0 = arith.muli %c0_i32, %c8_i32 : i32
    %1 = tpu.assume_multiple %0, 8 : i32
    %c0 = arith.constant 0 : index
    %c0_1 = arith.constant 0 : index
    %2 = arith.index_cast %1 : i32 to index
    %c0_2 = arith.constant 0 : index
    %3 = vector.load %arg2[%c0, %c0_1, %2, %c0_2] : memref<1x4x8x128xf32, #tpu.memory_space<vmem>>, vector<1x1x8x128xf32>
    %4 = vector.shape_cast %3 : vector<1x1x8x128xf32> to vector<8x128xf32>
    %c0_3 = arith.constant 0 : index
    %c1 = arith.constant 1 : index
    %5 = arith.index_cast %1 : i32 to index
    %c0_4 = arith.constant 0 : index
    %6 = vector.load %arg2[%c0_3, %c1, %5, %c0_4] : memref<1x4x8x128xf32, #tpu.memory_space<vmem>>, vector<1x1x8x128xf32>
    %7 = vector.shape_cast %6 : vector<1x1x8x128xf32> to vector<8x128xf32>
    %c0_5 = arith.constant 0 : index
    %c2 = arith.constant 2 : index
    %8 = arith.index_cast %1 : i32 to index
    %c0_6 = arith.constant 0 : index
    %9 = vector.load %arg2[%c0_5, %c2, %8, %c0_6] : memref<1x4x8x128xf32, #tpu.memory_space<vmem>>, vector<1x1x8x128xf32>
    %10 = vector.shape_cast %9 : vector<1x1x8x128xf32> to vector<8x128xf32>
    %c0_7 = arith.constant 0 : index
    %c3 = arith.constant 3 : index
    %11 = arith.index_cast %1 : i32 to index
    %c0_8 = arith.constant 0 : index
    %12 = vector.load %arg2[%c0_7, %c3, %11, %c0_8] : memref<1x4x8x128xf32, #tpu.memory_space<vmem>>, vector<1x1x8x128xf32>
    %13 = vector.shape_cast %12 : vector<1x1x8x128xf32> to vector<8x128xf32>
    %14 = arith.subf %10, %4 : vector<8x128xf32>
    %15 = arith.subf %13, %7 : vector<8x128xf32>
    %cst_9 = arith.constant 5.000000e-01 : f32
    %16 = vector.broadcast %cst_9 : f32 to vector<8x128xf32>
    %17 = arith.mulf %16, %14 : vector<8x128xf32>
    %18 = arith.addf %4, %17 : vector<8x128xf32>
    %cst_10 = arith.constant 5.000000e-01 : f32
    %19 = vector.broadcast %cst_10 : f32 to vector<8x128xf32>
    %20 = arith.mulf %19, %15 : vector<8x128xf32>
    %21 = arith.addf %7, %20 : vector<8x128xf32>
    %cst_11 = arith.constant 1.000000e-01 : f32
    %22 = vector.broadcast %cst_11 : f32 to vector<8x128xf32>
    %23 = arith.mulf %22, %14 : vector<8x128xf32>
    %cst_12 = arith.constant 1.000000e-01 : f32
    %24 = vector.broadcast %cst_12 : f32 to vector<8x128xf32>
    %25 = arith.mulf %24, %15 : vector<8x128xf32>
    %cst_13 = arith.constant 1.000000e-01 : f32
    %26 = vector.broadcast %cst_13 : f32 to vector<8x128xf32>
    %27 = arith.mulf %26, %14 : vector<8x128xf32>
    %cst_14 = arith.constant 1.000000e-01 : f32
    %28 = vector.broadcast %cst_14 : f32 to vector<8x128xf32>
    %29 = arith.mulf %28, %15 : vector<8x128xf32>
    %c0_15 = arith.constant 0 : index
    %c0_16 = arith.constant 0 : index
    %30 = arith.index_cast %1 : i32 to index
    %c0_17 = arith.constant 0 : index
    %31 = vector.load %arg3[%c0_15, %c0_16, %30, %c0_17] : memref<1x4x8x128xf32, #tpu.memory_space<vmem>>, vector<1x1x8x128xf32>
    %32 = vector.shape_cast %31 : vector<1x1x8x128xf32> to vector<8x128xf32>
    %c0_18 = arith.constant 0 : index
    %c1_19 = arith.constant 1 : index
    %33 = arith.index_cast %1 : i32 to index
    %c0_20 = arith.constant 0 : index
    %34 = vector.load %arg3[%c0_18, %c1_19, %33, %c0_20] : memref<1x4x8x128xf32, #tpu.memory_space<vmem>>, vector<1x1x8x128xf32>
    %35 = vector.shape_cast %34 : vector<1x1x8x128xf32> to vector<8x128xf32>
    %c0_21 = arith.constant 0 : index
    %c2_22 = arith.constant 2 : index
    %36 = arith.index_cast %1 : i32 to index
    %c0_23 = arith.constant 0 : index
    %37 = vector.load %arg3[%c0_21, %c2_22, %36, %c0_23] : memref<1x4x8x128xf32, #tpu.memory_space<vmem>>, vector<1x1x8x128xf32>
    %38 = vector.shape_cast %37 : vector<1x1x8x128xf32> to vector<8x128xf32>
    %c0_24 = arith.constant 0 : index
    %c3_25 = arith.constant 3 : index
    %39 = arith.index_cast %1 : i32 to index
    %c0_26 = arith.constant 0 : index
    %40 = vector.load %arg3[%c0_24, %c3_25, %39, %c0_26] : memref<1x4x8x128xf32, #tpu.memory_space<vmem>>, vector<1x1x8x128xf32>
    %41 = vector.shape_cast %40 : vector<1x1x8x128xf32> to vector<8x128xf32>
    %42 = arith.mulf %32, %23 : vector<8x128xf32>
    %43 = arith.addf %18, %42 : vector<8x128xf32>
    %44 = arith.mulf %35, %25 : vector<8x128xf32>
    %45 = arith.addf %21, %44 : vector<8x128xf32>
    %cst_27 = arith.constant 2.000000e-01 : f32
    %46 = vector.broadcast %cst_27 : f32 to vector<8x128xf32>
    %47 = arith.mulf %38, %46 : vector<8x128xf32>
    %48 = math.exp %47 : vector<8x128xf32>
    %cst_28 = arith.constant 5.000000e-01 : f32
    %49 = vector.broadcast %cst_28 : f32 to vector<8x128xf32>
    %50 = arith.mulf %49, %48 : vector<8x128xf32>
    %51 = arith.mulf %50, %14 : vector<8x128xf32>
    %cst_29 = arith.constant 2.000000e-01 : f32
    %52 = vector.broadcast %cst_29 : f32 to vector<8x128xf32>
    %53 = arith.mulf %41, %52 : vector<8x128xf32>
    %54 = math.exp %53 : vector<8x128xf32>
    %cst_30 = arith.constant 5.000000e-01 : f32
    %55 = vector.broadcast %cst_30 : f32 to vector<8x128xf32>
    %56 = arith.mulf %55, %54 : vector<8x128xf32>
    %57 = arith.mulf %56, %15 : vector<8x128xf32>
    %58 = arith.subf %43, %51 : vector<8x128xf32>
    %cst_31 = arith.constant 0.000000e+00 : f32
    %59 = vector.broadcast %cst_31 : f32 to vector<8x128xf32>
    %60 = arith.maximumf %59, %58 : vector<8x128xf32>
    %61 = vector.broadcast %cst : f32 to vector<8x128xf32>
    %62 = arith.minimumf %61, %60 : vector<8x128xf32>
    %c0_32 = arith.constant 0 : index
    %c0_33 = arith.constant 0 : index
    %63 = arith.index_cast %1 : i32 to index
    %c0_34 = arith.constant 0 : index
    %64 = vector.load %arg5[%c0_32, %c0_33, %63, %c0_34] : memref<1x4x8x128xf32, #tpu.memory_space<vmem>>, vector<1x1x8x128xf32>
    %65 = vector.shape_cast %64 : vector<1x1x8x128xf32> to vector<8x128xf32>
    %66 = vector.shape_cast %62 : vector<8x128xf32> to vector<1x1x8x128xf32>
    tpu.vector_store %arg5[%c0_32, %c0_33, %63, %c0_34], %66 {strides = array<i32>} : memref<1x4x8x128xf32, #tpu.memory_space<vmem>>, vector<1x1x8x128xf32>,
    %67 = arith.subf %45, %57 : vector<8x128xf32>
    %cst_35 = arith.constant 0.000000e+00 : f32
    %68 = vector.broadcast %cst_35 : f32 to vector<8x128xf32>
    %69 = arith.maximumf %68, %67 : vector<8x128xf32>
    %70 = vector.broadcast %cst_0 : f32 to vector<8x128xf32>
    %71 = arith.minimumf %70, %69 : vector<8x128xf32>
    %c0_36 = arith.constant 0 : index
    %c1_37 = arith.constant 1 : index
    %72 = arith.index_cast %1 : i32 to index
    %c0_38 = arith.constant 0 : index
    %73 = vector.load %arg5[%c0_36, %c1_37, %72, %c0_38] : memref<1x4x8x128xf32, #tpu.memory_space<vmem>>, vector<1x1x8x128xf32>
    %74 = vector.shape_cast %73 : vector<1x1x8x128xf32> to vector<8x128xf32>
    %75 = vector.shape_cast %71 : vector<8x128xf32> to vector<1x1x8x128xf32>
    tpu.vector_store %arg5[%c0_36, %c1_37, %72, %c0_38], %75 {strides = array<i32>} : memref<1x4x8x128xf32, #tpu.memory_space<vmem>>, vector<1x1x8x128xf32>,
    %76 = arith.addf %43, %51 : vector<8x128xf32>
    %cst_39 = arith.constant 0.000000e+00 : f32
    %77 = vector.broadcast %cst_39 : f32 to vector<8x128xf32>
    %78 = arith.maximumf %77, %76 : vector<8x128xf32>
    %79 = vector.broadcast %cst : f32 to vector<8x128xf32>
    %80 = arith.minimumf %79, %78 : vector<8x128xf32>
    %c0_40 = arith.constant 0 : index
    %c2_41 = arith.constant 2 : index
    %81 = arith.index_cast %1 : i32 to index
    %c0_42 = arith.constant 0 : index
    %82 = vector.load %arg5[%c0_40, %c2_41, %81, %c0_42] : memref<1x4x8x128xf32, #tpu.memory_space<vmem>>, vector<1x1x8x128xf32>
    %83 = vector.shape_cast %82 : vector<1x1x8x128xf32> to vector<8x128xf32>
    %84 = vector.shape_cast %80 : vector<8x128xf32> to vector<1x1x8x128xf32>
    tpu.vector_store %arg5[%c0_40, %c2_41, %81, %c0_42], %84 {strides = array<i32>} : memref<1x4x8x128xf32, #tpu.memory_space<vmem>>, vector<1x1x8x128xf32>,
    %85 = arith.addf %45, %57 : vector<8x128xf32>
    %cst_43 = arith.constant 0.000000e+00 : f32
    %86 = vector.broadcast %cst_43 : f32 to vector<8x128xf32>
    %87 = arith.maximumf %86, %85 : vector<8x128xf32>
    %88 = vector.broadcast %cst_0 : f32 to vector<8x128xf32>
    %89 = arith.minimumf %88, %87 : vector<8x128xf32>
    %c0_44 = arith.constant 0 : index
    %c3_45 = arith.constant 3 : index
    %90 = arith.index_cast %1 : i32 to index
    %c0_46 = arith.constant 0 : index
    %91 = vector.load %arg5[%c0_44, %c3_45, %90, %c0_46] : memref<1x4x8x128xf32, #tpu.memory_space<vmem>>, vector<1x1x8x128xf32>
    %92 = vector.shape_cast %91 : vector<1x1x8x128xf32> to vector<8x128xf32>
    %93 = vector.shape_cast %89 : vector<8x128xf32> to vector<1x1x8x128xf32>
    tpu.vector_store %arg5[%c0_44, %c3_45, %90, %c0_46], %93 {strides = array<i32>} : memref<1x4x8x128xf32, #tpu.memory_space<vmem>>, vector<1x1x8x128xf32>,
    %c0_47 = arith.constant 0 : index
    %c0_48 = arith.constant 0 : index
    %94 = arith.index_cast %1 : i32 to index
    %c0_49 = arith.constant 0 : index
    %95 = vector.load %arg4[%c0_47, %c0_48, %94, %c0_49] : memref<1x10x8x128xf32, #tpu.memory_space<vmem>>, vector<1x1x8x128xf32>
    %96 = vector.shape_cast %95 : vector<1x1x8x128xf32> to vector<8x128xf32>
    %c0_50 = arith.constant 0 : index
    %c1_51 = arith.constant 1 : index
    %97 = arith.index_cast %1 : i32 to index
    %c0_52 = arith.constant 0 : index
    %98 = vector.load %arg4[%c0_50, %c1_51, %97, %c0_52] : memref<1x10x8x128xf32, #tpu.memory_space<vmem>>, vector<1x1x8x128xf32>
    %99 = vector.shape_cast %98 : vector<1x1x8x128xf32> to vector<8x128xf32>
    %100 = arith.mulf %96, %27 : vector<8x128xf32>
    %101 = arith.addf %18, %100 : vector<8x128xf32>
    %cst_53 = arith.constant 0.000000e+00 : f32
    %102 = vector.broadcast %cst_53 : f32 to vector<8x128xf32>
    %103 = arith.maximumf %102, %101 : vector<8x128xf32>
    %104 = vector.broadcast %cst : f32 to vector<8x128xf32>
    %105 = arith.minimumf %104, %103 : vector<8x128xf32>
    %c0_54 = arith.constant 0 : index
    %c0_55 = arith.constant 0 : index
    %106 = arith.index_cast %1 : i32 to index
    %c0_56 = arith.constant 0 : index
    %107 = vector.load %arg6[%c0_54, %c0_55, %106, %c0_56] : memref<1x10x8x128xf32, #tpu.memory_space<vmem>>, vector<1x1x8x128xf32>
    %108 = vector.shape_cast %107 : vector<1x1x8x128xf32> to vector<8x128xf32>
    %109 = vector.shape_cast %105 : vector<8x128xf32> to vector<1x1x8x128xf32>
    tpu.vector_store %arg6[%c0_54, %c0_55, %106, %c0_56], %109 {strides = array<i32>} : memref<1x10x8x128xf32, #tpu.memory_space<vmem>>, vector<1x1x8x128xf32>,
    %110 = arith.mulf %99, %29 : vector<8x128xf32>
    %111 = arith.addf %21, %110 : vector<8x128xf32>
    %cst_57 = arith.constant 0.000000e+00 : f32
    %112 = vector.broadcast %cst_57 : f32 to vector<8x128xf32>
    %113 = arith.maximumf %112, %111 : vector<8x128xf32>
    %114 = vector.broadcast %cst_0 : f32 to vector<8x128xf32>
    %115 = arith.minimumf %114, %113 : vector<8x128xf32>
    %c0_58 = arith.constant 0 : index
    %c1_59 = arith.constant 1 : index
    %116 = arith.index_cast %1 : i32 to index
    %c0_60 = arith.constant 0 : index
    %117 = vector.load %arg6[%c0_58, %c1_59, %116, %c0_60] : memref<1x10x8x128xf32, #tpu.memory_space<vmem>>, vector<1x1x8x128xf32>
    %118 = vector.shape_cast %117 : vector<1x1x8x128xf32> to vector<8x128xf32>
    %119 = vector.shape_cast %115 : vector<8x128xf32> to vector<1x1x8x128xf32>
    tpu.vector_store %arg6[%c0_58, %c1_59, %116, %c0_60], %119 {strides = array<i32>} : memref<1x10x8x128xf32, #tpu.memory_space<vmem>>, vector<1x1x8x128xf32>,
    %c0_61 = arith.constant 0 : index
    %c2_62 = arith.constant 2 : index
    %120 = arith.index_cast %1 : i32 to index
    %c0_63 = arith.constant 0 : index
    %121 = vector.load %arg4[%c0_61, %c2_62, %120, %c0_63] : memref<1x10x8x128xf32, #tpu.memory_space<vmem>>, vector<1x1x8x128xf32>
    %122 = vector.shape_cast %121 : vector<1x1x8x128xf32> to vector<8x128xf32>
    %c0_64 = arith.constant 0 : index
    %c3_65 = arith.constant 3 : index
    %123 = arith.index_cast %1 : i32 to index
    %c0_66 = arith.constant 0 : index
    %124 = vector.load %arg4[%c0_64, %c3_65, %123, %c0_66] : memref<1x10x8x128xf32, #tpu.memory_space<vmem>>, vector<1x1x8x128xf32>
    %125 = vector.shape_cast %124 : vector<1x1x8x128xf32> to vector<8x128xf32>
    %126 = arith.mulf %122, %27 : vector<8x128xf32>
    %127 = arith.addf %18, %126 : vector<8x128xf32>
    %cst_67 = arith.constant 0.000000e+00 : f32
    %128 = vector.broadcast %cst_67 : f32 to vector<8x128xf32>
    %129 = arith.maximumf %128, %127 : vector<8x128xf32>
    %130 = vector.broadcast %cst : f32 to vector<8x128xf32>
    %131 = arith.minimumf %130, %129 : vector<8x128xf32>
    %c0_68 = arith.constant 0 : index
    %c2_69 = arith.constant 2 : index
    %132 = arith.index_cast %1 : i32 to index
    %c0_70 = arith.constant 0 : index
    %133 = vector.load %arg6[%c0_68, %c2_69, %132, %c0_70] : memref<1x10x8x128xf32, #tpu.memory_space<vmem>>, vector<1x1x8x128xf32>
    %134 = vector.shape_cast %133 : vector<1x1x8x128xf32> to vector<8x128xf32>
    %135 = vector.shape_cast %131 : vector<8x128xf32> to vector<1x1x8x128xf32>
    tpu.vector_store %arg6[%c0_68, %c2_69, %132, %c0_70], %135 {strides = array<i32>} : memref<1x10x8x128xf32, #tpu.memory_space<vmem>>, vector<1x1x8x128xf32>,
    %136 = arith.mulf %125, %29 : vector<8x128xf32>
    %137 = arith.addf %21, %136 : vector<8x128xf32>
    %cst_71 = arith.constant 0.000000e+00 : f32
    %138 = vector.broadcast %cst_71 : f32 to vector<8x128xf32>
    %139 = arith.maximumf %138, %137 : vector<8x128xf32>
    %140 = vector.broadcast %cst_0 : f32 to vector<8x128xf32>
    %141 = arith.minimumf %140, %139 : vector<8x128xf32>
    %c0_72 = arith.constant 0 : index
    %c3_73 = arith.constant 3 : index
    %142 = arith.index_cast %1 : i32 to index
    %c0_74 = arith.constant 0 : index
    %143 = vector.load %arg6[%c0_72, %c3_73, %142, %c0_74] : memref<1x10x8x128xf32, #tpu.memory_space<vmem>>, vector<1x1x8x128xf32>
    %144 = vector.shape_cast %143 : vector<1x1x8x128xf32> to vector<8x128xf32>
    %145 = vector.shape_cast %141 : vector<8x128xf32> to vector<1x1x8x128xf32>
    tpu.vector_store %arg6[%c0_72, %c3_73, %142, %c0_74], %145 {strides = array<i32>} : memref<1x10x8x128xf32, #tpu.memory_space<vmem>>, vector<1x1x8x128xf32>,
    %c0_75 = arith.constant 0 : index
    %c4 = arith.constant 4 : index
    %146 = arith.index_cast %1 : i32 to index
    %c0_76 = arith.constant 0 : index
    %147 = vector.load %arg4[%c0_75, %c4, %146, %c0_76] : memref<1x10x8x128xf32, #tpu.memory_space<vmem>>, vector<1x1x8x128xf32>
    %148 = vector.shape_cast %147 : vector<1x1x8x128xf32> to vector<8x128xf32>
    %c0_77 = arith.constant 0 : index
    %c5 = arith.constant 5 : index
    %149 = arith.index_cast %1 : i32 to index
    %c0_78 = arith.constant 0 : index
    %150 = vector.load %arg4[%c0_77, %c5, %149, %c0_78] : memref<1x10x8x128xf32, #tpu.memory_space<vmem>>, vector<1x1x8x128xf32>
    %151 = vector.shape_cast %150 : vector<1x1x8x128xf32> to vector<8x128xf32>
    %152 = arith.mulf %148, %27 : vector<8x128xf32>
    %153 = arith.addf %18, %152 : vector<8x128xf32>
    %cst_79 = arith.constant 0.000000e+00 : f32
    %154 = vector.broadcast %cst_79 : f32 to vector<8x128xf32>
    %155 = arith.maximumf %154, %153 : vector<8x128xf32>
    %156 = vector.broadcast %cst : f32 to vector<8x128xf32>
    %157 = arith.minimumf %156, %155 : vector<8x128xf32>
    %c0_80 = arith.constant 0 : index
    %c4_81 = arith.constant 4 : index
    %158 = arith.index_cast %1 : i32 to index
    %c0_82 = arith.constant 0 : index
    %159 = vector.load %arg6[%c0_80, %c4_81, %158, %c0_82] : memref<1x10x8x128xf32, #tpu.memory_space<vmem>>, vector<1x1x8x128xf32>
    %160 = vector.shape_cast %159 : vector<1x1x8x128xf32> to vector<8x128xf32>
    %161 = vector.shape_cast %157 : vector<8x128xf32> to vector<1x1x8x128xf32>
    tpu.vector_store %arg6[%c0_80, %c4_81, %158, %c0_82], %161 {strides = array<i32>} : memref<1x10x8x128xf32, #tpu.memory_space<vmem>>, vector<1x1x8x128xf32>,
    %162 = arith.mulf %151, %29 : vector<8x128xf32>
    %163 = arith.addf %21, %162 : vector<8x128xf32>
    %cst_83 = arith.constant 0.000000e+00 : f32
    %164 = vector.broadcast %cst_83 : f32 to vector<8x128xf32>
    %165 = arith.maximumf %164, %163 : vector<8x128xf32>
    %166 = vector.broadcast %cst_0 : f32 to vector<8x128xf32>
    %167 = arith.minimumf %166, %165 : vector<8x128xf32>
    %c0_84 = arith.constant 0 : index
    %c5_85 = arith.constant 5 : index
    %168 = arith.index_cast %1 : i32 to index
    %c0_86 = arith.constant 0 : index
    %169 = vector.load %arg6[%c0_84, %c5_85, %168, %c0_86] : memref<1x10x8x128xf32, #tpu.memory_space<vmem>>, vector<1x1x8x128xf32>
    %170 = vector.shape_cast %169 : vector<1x1x8x128xf32> to vector<8x128xf32>
    %171 = vector.shape_cast %167 : vector<8x128xf32> to vector<1x1x8x128xf32>
    tpu.vector_store %arg6[%c0_84, %c5_85, %168, %c0_86], %171 {strides = array<i32>} : memref<1x10x8x128xf32, #tpu.memory_space<vmem>>, vector<1x1x8x128xf32>,
    %c0_87 = arith.constant 0 : index
    %c6 = arith.constant 6 : index
    %172 = arith.index_cast %1 : i32 to index
    %c0_88 = arith.constant 0 : index
    %173 = vector.load %arg4[%c0_87, %c6, %172, %c0_88] : memref<1x10x8x128xf32, #tpu.memory_space<vmem>>, vector<1x1x8x128xf32>
    %174 = vector.shape_cast %173 : vector<1x1x8x128xf32> to vector<8x128xf32>
    %c0_89 = arith.constant 0 : index
    %c7 = arith.constant 7 : index
    %175 = arith.index_cast %1 : i32 to index
    %c0_90 = arith.constant 0 : index
    %176 = vector.load %arg4[%c0_89, %c7, %175, %c0_90] : memref<1x10x8x128xf32, #tpu.memory_space<vmem>>, vector<1x1x8x128xf32>
    %177 = vector.shape_cast %176 : vector<1x1x8x128xf32> to vector<8x128xf32>
    %178 = arith.mulf %174, %27 : vector<8x128xf32>
    %179 = arith.addf %18, %178 : vector<8x128xf32>
    %cst_91 = arith.constant 0.000000e+00 : f32
    %180 = vector.broadcast %cst_91 : f32 to vector<8x128xf32>
    %181 = arith.maximumf %180, %179 : vector<8x128xf32>
    %182 = vector.broadcast %cst : f32 to vector<8x128xf32>
    %183 = arith.minimumf %182, %181 : vector<8x128xf32>
    %c0_92 = arith.constant 0 : index
    %c6_93 = arith.constant 6 : index
    %184 = arith.index_cast %1 : i32 to index
    %c0_94 = arith.constant 0 : index
    %185 = vector.load %arg6[%c0_92, %c6_93, %184, %c0_94] : memref<1x10x8x128xf32, #tpu.memory_space<vmem>>, vector<1x1x8x128xf32>
    %186 = vector.shape_cast %185 : vector<1x1x8x128xf32> to vector<8x128xf32>
    %187 = vector.shape_cast %183 : vector<8x128xf32> to vector<1x1x8x128xf32>
    tpu.vector_store %arg6[%c0_92, %c6_93, %184, %c0_94], %187 {strides = array<i32>} : memref<1x10x8x128xf32, #tpu.memory_space<vmem>>, vector<1x1x8x128xf32>,
    %188 = arith.mulf %177, %29 : vector<8x128xf32>
    %189 = arith.addf %21, %188 : vector<8x128xf32>
    %cst_95 = arith.constant 0.000000e+00 : f32
    %190 = vector.broadcast %cst_95 : f32 to vector<8x128xf32>
    %191 = arith.maximumf %190, %189 : vector<8x128xf32>
    %192 = vector.broadcast %cst_0 : f32 to vector<8x128xf32>
    %193 = arith.minimumf %192, %191 : vector<8x128xf32>
    %c0_96 = arith.constant 0 : index
    %c7_97 = arith.constant 7 : index
    %194 = arith.index_cast %1 : i32 to index
    %c0_98 = arith.constant 0 : index
    %195 = vector.load %arg6[%c0_96, %c7_97, %194, %c0_98] : memref<1x10x8x128xf32, #tpu.memory_space<vmem>>, vector<1x1x8x128xf32>
    %196 = vector.shape_cast %195 : vector<1x1x8x128xf32> to vector<8x128xf32>
    %197 = vector.shape_cast %193 : vector<8x128xf32> to vector<1x1x8x128xf32>
    tpu.vector_store %arg6[%c0_96, %c7_97, %194, %c0_98], %197 {strides = array<i32>} : memref<1x10x8x128xf32, #tpu.memory_space<vmem>>, vector<1x1x8x128xf32>,
    %c0_99 = arith.constant 0 : index
    %c8 = arith.constant 8 : index
    %198 = arith.index_cast %1 : i32 to index
    %c0_100 = arith.constant 0 : index
    %199 = vector.load %arg4[%c0_99, %c8, %198, %c0_100] : memref<1x10x8x128xf32, #tpu.memory_space<vmem>>, vector<1x1x8x128xf32>
    %200 = vector.shape_cast %199 : vector<1x1x8x128xf32> to vector<8x128xf32>
    %c0_101 = arith.constant 0 : index
    %c9 = arith.constant 9 : index
    %201 = arith.index_cast %1 : i32 to index
    %c0_102 = arith.constant 0 : index
    %202 = vector.load %arg4[%c0_101, %c9, %201, %c0_102] : memref<1x10x8x128xf32, #tpu.memory_space<vmem>>, vector<1x1x8x128xf32>
    %203 = vector.shape_cast %202 : vector<1x1x8x128xf32> to vector<8x128xf32>
    %204 = arith.mulf %200, %27 : vector<8x128xf32>
    %205 = arith.addf %18, %204 : vector<8x128xf32>
    %cst_103 = arith.constant 0.000000e+00 : f32
    %206 = vector.broadcast %cst_103 : f32 to vector<8x128xf32>
    %207 = arith.maximumf %206, %205 : vector<8x128xf32>
    %208 = vector.broadcast %cst : f32 to vector<8x128xf32>
    %209 = arith.minimumf %208, %207 : vector<8x128xf32>
    %c0_104 = arith.constant 0 : index
    %c8_105 = arith.constant 8 : index
    %210 = arith.index_cast %1 : i32 to index
    %c0_106 = arith.constant 0 : index
    %211 = vector.load %arg6[%c0_104, %c8_105, %210, %c0_106] : memref<1x10x8x128xf32, #tpu.memory_space<vmem>>, vector<1x1x8x128xf32>
    %212 = vector.shape_cast %211 : vector<1x1x8x128xf32> to vector<8x128xf32>
    %213 = vector.shape_cast %209 : vector<8x128xf32> to vector<1x1x8x128xf32>
    tpu.vector_store %arg6[%c0_104, %c8_105, %210, %c0_106], %213 {strides = array<i32>} : memref<1x10x8x128xf32, #tpu.memory_space<vmem>>, vector<1x1x8x128xf32>,
    %214 = arith.mulf %203, %29 : vector<8x128xf32>
    %215 = arith.addf %21, %214 : vector<8x128xf32>
    %cst_107 = arith.constant 0.000000e+00 : f32
    %216 = vector.broadcast %cst_107 : f32 to vector<8x128xf32>
    %217 = arith.maximumf %216, %215 : vector<8x128xf32>
    %218 = vector.broadcast %cst_0 : f32 to vector<8x128xf32>
    %219 = arith.minimumf %218, %217 : vector<8x128xf32>
    %c0_108 = arith.constant 0 : index
    %c9_109 = arith.constant 9 : index
    %220 = arith.index_cast %1 : i32 to index
    %c0_110 = arith.constant 0 : index
    %221 = vector.load %arg6[%c0_108, %c9_109, %220, %c0_110] : memref<1x10x8x128xf32, #tpu.memory_space<vmem>>, vector<1x1x8x128xf32>
    %222 = vector.shape_cast %221 : vector<1x1x8x128xf32> to vector<8x128xf32>
    %223 = vector.shape_cast %219 : vector<8x128xf32> to vector<1x1x8x128xf32>
    tpu.vector_store %arg6[%c0_108, %c9_109, %220, %c0_110], %223 {strides = array<i32>} : memref<1x10x8x128xf32, #tpu.memory_space<vmem>>, vector<1x1x8x128xf32>,
    %c1_i32 = arith.constant 1 : i32
    return
  }
  func.func @transform_0(%arg0: i32, %arg1: i32) -> (i32, i32, i32, i32) {
    %c0_i32 = arith.constant 0 : i32
    %c0_i32_0 = arith.constant 0 : i32
    %c0_i32_1 = arith.constant 0 : i32
    return %arg0, %c0_i32, %arg1, %c0_i32_0 : i32, i32, i32, i32
  }
  func.func @transform_1(%arg0: i32, %arg1: i32) -> (i32, i32, i32, i32) {
    %c0_i32 = arith.constant 0 : i32
    %c0_i32_0 = arith.constant 0 : i32
    %c0_i32_1 = arith.constant 0 : i32
    return %arg0, %c0_i32, %arg1, %c0_i32_0 : i32, i32, i32, i32
  }
  func.func @transform_2(%arg0: i32, %arg1: i32) -> (i32, i32, i32, i32) {
    %c0_i32 = arith.constant 0 : i32
    %c0_i32_0 = arith.constant 0 : i32
    %c0_i32_1 = arith.constant 0 : i32
    return %arg0, %c0_i32, %arg1, %c0_i32_0 : i32, i32, i32, i32
  }
  func.func @transform_3(%arg0: i32, %arg1: i32) -> (i32, i32, i32, i32) {
    %c0_i32 = arith.constant 0 : i32
    %c0_i32_0 = arith.constant 0 : i32
    %c0_i32_1 = arith.constant 0 : i32
    return %arg0, %c0_i32, %arg1, %c0_i32_0 : i32, i32, i32, i32
  }
  func.func @transform_4(%arg0: i32, %arg1: i32) -> (i32, i32, i32, i32) {
    %c0_i32 = arith.constant 0 : i32
    %c0_i32_0 = arith.constant 0 : i32
    %c0_i32_1 = arith.constant 0 : i32
    return %arg0, %c0_i32, %arg1, %c0_i32_0 : i32, i32, i32, i32
  }
}

</mosaic_0001>

<llo_original>
// kernel: tpu_custom_call.1
$region0: #{tpu_custom_call.1}
  #allocation0 [shape = 'u32[]', space=smem, size = 0x4, offset = 0x4, fixed_abs, tag = 'smem constant byte address 0x4 - core index']
  #allocation1 [shape = 'u32[72,128]{1,0:T(1,128)}', space=vmem, size = 0x9000, scoped, tag = 'internal scratch']
  %s0 = inlined_call_operand.hbm [shape: f32[2,4,8,128], index: 0, kind: input, shape index: {}]
  %s1 = inlined_call_operand.hbm [shape: f32[2,4,8,128], index: 1, kind: input, shape index: {}]
  %s2 = inlined_call_operand.hbm [shape: f32[2,10,8,128], index: 2, kind: input, shape index: {}]
  %s3 = inlined_call_operand.hbm [shape: f32[2,4,8,128], index: 3, kind: output, shape index: {0}]
  %s4 = inlined_call_operand.hbm [shape: f32[2,10,8,128], index: 4, kind: output, shape index: {1}]
  %5 = xla_tuple %s3, %s4
  %s6 = sld [smem:[#allocation0]]
  $region65: #{tpu_custom_call.1} parent=0
    _
  %s8 = ssub.s32 1, %s6
  %s9 = scalar_select 0, %s8, %s6
  $region1: #{tpu_custom_call.1} parent=0
    #allocation2 [shape = 'u8[32768]{0}', space=vmem, size = 0x8000, scoped, tag = 'input window, operand 0']
    #allocation3 [shape = 's32[2]{0}', space=sflag, size = 0x8, scoped, tag = 'scoped memory for tpu_custom_call.1']
    #allocation4 [shape = 's32[2]{0}', space=sflag, size = 0x8, scoped, tag = 'scoped memory for tpu_custom_call.1']
    #allocation5 [shape = 'u8[32768]{0}', space=vmem, size = 0x8000, scoped, tag = 'input window, operand 1']
    #allocation6 [shape = 's32[2]{0}', space=sflag, size = 0x8, scoped, tag = 'scoped memory for tpu_custom_call.1']
    #allocation7 [shape = 'u8[81920]{0}', space=vmem, size = 0x14000, scoped, tag = 'input window, operand 2']
    #allocation8 [shape = 'u8[32768]{0}', space=vmem, size = 0x8000, scoped, tag = 'output window, operand 0']
    #allocation9 [shape = 'u8[81920]{0}', space=vmem, size = 0x14000, scoped, tag = 'output window, operand 1']
    #allocation10 [shape = 's32[2]{0}', space=sflag, size = 0x8, scoped, tag = 'scoped memory for tpu_custom_call.1']
    %10 = vsyncpa [#allocation3], 0
    %s11 = scalar_lea.sflag [#allocation3], 1
    %12 = vsyncpa %s11, 0
    %13 = vsyncpa [#allocation6], 0
    %s14 = scalar_lea.sflag [#allocation6], 1
    %15 = vsyncpa %s14, 0
    %16 = vsyncpa [#allocation4], 0
    %s17 = scalar_lea.sflag [#allocation4], 1
    %18 = vsyncpa %s17, 0
    %19 = vsyncpa [#allocation10], 0
    %s20 = scalar_lea.sflag [#allocation10], 1
    %21 = vsyncpa %s20, 0
    loop: start=0, step=1, limit=4
    $region2: #{tpu_custom_call.1} parent=1 // loop_pre_header
      _
    $region3: #{tpu_custom_call.1} parent=1 // loop_header
      %s23 = sphi 0, %s27
      %p24 = scmp.ge.s32.totalorder %s23, 4
      %s30 = sphi 0, %s42
      %s31 = sphi 0, %s38
      %s32 = sphi 0, %s30
      %s33 = sphi 0, %s31
      %s34 = sphi 0, %s32
      %s35 = sphi 0, %s33
      %s47 = sphi 0, %s49
      %s50 = sphi 0, %s47
      %s51 = sphi 0, %s50
      %s67 = sphi 0, %s51
      %s75 = sphi 0, %s77
      %s78 = sphi 0, %s75
      %s79 = sphi 0, %s78
      %s95 = sphi 0, %s79
      %s103 = sphi 0, %s105
      %s106 = sphi 0, %s103
      %s107 = sphi 0, %s106
      %s123 = sphi 0, %s107
      %s131 = sphi 0, %s133
      %s134 = sphi 0, %s131
      %s135 = sphi 0, %s134
      %s151 = sphi 0, %s135
      %s159 = sphi 0, %s161
      %s162 = sphi 0, %s159
      %s163 = sphi 0, %s162
      %s179 = sphi 0, %s163
    $region4: #{tpu_custom_call.1} parent=1 // loop_header_branch
      %26 = sbr.rel (%p24) target = $region8
    $region5: #{tpu_custom_call.1} parent=1 // loop_body
      %s28 = ssub.s32 %s23, 1
      %s29 = ssub.s32 %s23, 2
      %s36 = sadd.s32 1, %s31
      %p37 = scmp.ge.s32.totalorder %s36, 1
      %s38 = scalar_select %p37, 0, %s36
      %s39 = sadd.s32 1, %s30
      %s40 = scalar_select %p37, %s39, %s30
      %p41 = scmp.ge.s32.totalorder %s40, 2
      %s42 = scalar_select %p41, 0, %s40
      %s43 = ssub.s32 %s30, %s42
      %s44 = ssub.s32 %s31, %s38
      %s45 = sor.u32 %s43, %s44
      %p46 = scmp.eq.s32.totalorder %s45, 0
      %s48 = sadd.s32 %s47, 1
      %s49 = scalar_select %p46, %s47, %s48
      %p52 = pneg %p46
      %p53 = scmp.eq.s32.totalorder %s23, 1
      %p54 = por %p52, %p53
      %p55 = scmp.ne.s32.totalorder %s47, %s50
      %p56 = scmp.eq.s32.totalorder %s23, 0
      %p57 = por %p55, %p56
      %p58 = scmp.ne.s32.totalorder %s47, %s50
      %p59 = scmp.eq.s32.totalorder %s28, 1
      %p60 = por %p58, %p59
      %p61 = scmp.ne.s32.totalorder %s50, %s51
      %p62 = scmp.eq.s32.totalorder %s28, 0
      %p63 = por %p61, %p62
      %p64 = scmp.ne.s32.totalorder %s50, %s51
      %p65 = scmp.eq.s32.totalorder %s29, 1
      %p66 = por %p64, %p65
      %p68 = scmp.ne.s32.totalorder %s51, %s67
      %p69 = scmp.eq.s32.totalorder %s29, 0
      %p70 = por %p68, %p69
      %s71 = ssub.s32 %s30, %s42
      %s72 = ssub.s32 %s31, %s38
      %s73 = sor.u32 %s71, %s72
      %p74 = scmp.eq.s32.totalorder %s73, 0
      %s76 = sadd.s32 %s75, 1
      %s77 = scalar_select %p74, %s75, %s76
      %p80 = pneg %p74
      %p81 = scmp.eq.s32.totalorder %s23, 1
      %p82 = por %p80, %p81
      %p83 = scmp.ne.s32.totalorder %s75, %s78
      %p84 = scmp.eq.s32.totalorder %s23, 0
      %p85 = por %p83, %p84
      %p86 = scmp.ne.s32.totalorder %s75, %s78
      %p87 = scmp.eq.s32.totalorder %s28, 1
      %p88 = por %p86, %p87
      %p89 = scmp.ne.s32.totalorder %s78, %s79
      %p90 = scmp.eq.s32.totalorder %s28, 0
      %p91 = por %p89, %p90
      %p92 = scmp.ne.s32.totalorder %s78, %s79
      %p93 = scmp.eq.s32.totalorder %s29, 1
      %p94 = por %p92, %p93
      %p96 = scmp.ne.s32.totalorder %s79, %s95
      %p97 = scmp.eq.s32.totalorder %s29, 0
      %p98 = por %p96, %p97
      %s99 = ssub.s32 %s30, %s42
      %s100 = ssub.s32 %s31, %s38
      %s101 = sor.u32 %s99, %s100
      %p102 = scmp.eq.s32.totalorder %s101, 0
      %s104 = sadd.s32 %s103, 1
      %s105 = scalar_select %p102, %s103, %s104
      %p108 = pneg %p102
      %p109 = scmp.eq.s32.totalorder %s23, 1
      %p110 = por %p108, %p109
      %p111 = scmp.ne.s32.totalorder %s103, %s106
      %p112 = scmp.eq.s32.totalorder %s23, 0
      %p113 = por %p111, %p112
      %p114 = scmp.ne.s32.totalorder %s103, %s106
      %p115 = scmp.eq.s32.totalorder %s28, 1
      %p116 = por %p114, %p115
      %p117 = scmp.ne.s32.totalorder %s106, %s107
      %p118 = scmp.eq.s32.totalorder %s28, 0
      %p119 = por %p117, %p118
      %p120 = scmp.ne.s32.totalorder %s106, %s107
      %p121 = scmp.eq.s32.totalorder %s29, 1
      %p122 = por %p120, %p121
      %p124 = scmp.ne.s32.totalorder %s107, %s123
      %p125 = scmp.eq.s32.totalorder %s29, 0
      %p126 = por %p124, %p125
      %s127 = ssub.s32 %s30, %s42
      %s128 = ssub.s32 %s31, %s38
      %s129 = sor.u32 %s127, %s128
      %p130 = scmp.eq.s32.totalorder %s129, 0
      %s132 = sadd.s32 %s131, 1
      %s133 = scalar_select %p130, %s131, %s132
      %p136 = pneg %p130
      %p137 = scmp.eq.s32.totalorder %s23, 1
      %p138 = por %p136, %p137
      %p139 = scmp.ne.s32.totalorder %s131, %s134
      %p140 = scmp.eq.s32.totalorder %s23, 0
      %p141 = por %p139, %p140
      %p142 = scmp.ne.s32.totalorder %s131, %s134
      %p143 = scmp.eq.s32.totalorder %s28, 1
      %p144 = por %p142, %p143
      %p145 = scmp.ne.s32.totalorder %s134, %s135
      %p146 = scmp.eq.s32.totalorder %s28, 0
      %p147 = por %p145, %p146
      %p148 = scmp.ne.s32.totalorder %s134, %s135
      %p149 = scmp.eq.s32.totalorder %s29, 1
      %p150 = por %p148, %p149
      %p152 = scmp.ne.s32.totalorder %s135, %s151
      %p153 = scmp.eq.s32.totalorder %s29, 0
      %p154 = por %p152, %p153
      %s155 = ssub.s32 %s30, %s42
      %s156 = ssub.s32 %s31, %s38
      %s157 = sor.u32 %s155, %s156
      %p158 = scmp.eq.s32.totalorder %s157, 0
      %s160 = sadd.s32 %s159, 1
      %s161 = scalar_select %p158, %s159, %s160
      %p164 = pneg %p158
      %p165 = scmp.eq.s32.totalorder %s23, 1
      %p166 = por %p164, %p165
      %p167 = scmp.ne.s32.totalorder %s159, %s162
      %p168 = scmp.eq.s32.totalorder %s23, 0
      %p169 = por %p167, %p168
      %p170 = scmp.ne.s32.totalorder %s159, %s162
      %p171 = scmp.eq.s32.totalorder %s28, 1
      %p172 = por %p170, %p171
      %p173 = scmp.ne.s32.totalorder %s162, %s163
      %p174 = scmp.eq.s32.totalorder %s28, 0
      %p175 = por %p173, %p174
      %p176 = scmp.ne.s32.totalorder %s162, %s163
      %p177 = scmp.eq.s32.totalorder %s29, 1
      %p178 = por %p176, %p177
      %p180 = scmp.ne.s32.totalorder %s163, %s179
      %p181 = scmp.eq.s32.totalorder %s29, 0
      %p182 = por %p180, %p181
      %p183 = scmp.le.s32.totalorder 1, %s23
      %p184 = scmp.lt.s32.totalorder %s23, 3
      %p185 = pnand %p183, %p184
      %p186 = pneg %p185
      // Predicated region
      $region9: #{tpu_custom_call.1} parent=5 // pred_check
        _
      $region10: #{tpu_custom_call.1} parent=5 // pred_check_branch
        %188 = sbr.rel (%p185) target = $region12
      $region11: #{tpu_custom_call.1} parent=5 // pred_region
        %s189 = ssub.s32 %s23, 1
      $region12: #{tpu_custom_call.1} parent=5 // pred_fallthru
        _
      %p190 = scmp.lt.s32.totalorder %s23, 2
      // Predicated region
      $region13: #{tpu_custom_call.1} parent=5 // pred_check
        %p191 = pneg %p190
      $region14: #{tpu_custom_call.1} parent=5 // pred_check_branch
        %193 = sbr.rel (%p191) target = $region16
      $region15: #{tpu_custom_call.1} parent=5 // pred_region
        // Predicated region
        $region17: #{tpu_custom_call.1} parent=15 // pred_check
          %p194 = pneg %p57
        $region18: #{tpu_custom_call.1} parent=15 // pred_check_branch
          %196 = sbr.rel (%p194) target = $region20
        $region19: #{tpu_custom_call.1} parent=15 // pred_region
          %s197 = sand.u32 %s47, 1
          %s198 = scalar_lea.sflag [#allocation3], %s197
          %s199 = sand.u32 %s47, 1
          %s200 = smul.addr %s199, 32
          %s201 = scalar_lea.vmem [#allocation2], %s200
          %203 = vsyncadd %s198, 0
          %s204 = smul.addr %s30, 4
          %s205 = sadd.s32 %s31, %s204
          %s206 = smul.addr %s205, 8
          %s207 = scalar_lea.hbm %s0, %s206
          %s208 = sshll.u32 %s207, 4
          %s209 = int_to_ptr.hbm [resolvable:$true] %s208
          %s210 = sshll.u32 %s201, 4
          %s211 = int_to_ptr.vmem [resolvable:$true] %s210
          %216 = dma.hbm_to_vmem [thread:$0]  %s209, 512, %s211, %s198, 128, 128, 8
        $region20: #{tpu_custom_call.1} parent=15 // pred_fallthru
          _
        // Predicated region
        $region21: #{tpu_custom_call.1} parent=15 // pred_check
          %p217 = pneg %p85
        $region22: #{tpu_custom_call.1} parent=15 // pred_check_branch
          %219 = sbr.rel (%p217) target = $region24
        $region23: #{tpu_custom_call.1} parent=15 // pred_region
          %s220 = sand.u32 %s23, 1
          %s221 = scalar_lea.sflag [#allocation6], %s220
          %s222 = sand.u32 %s75, 1
          %s223 = smul.addr %s222, 32
          %s224 = scalar_lea.vmem [#allocation5], %s223
          %226 = vsyncadd %s221, 0
          %s227 = smul.addr %s30, 4
          %s228 = sadd.s32 %s31, %s227
          %s229 = smul.addr %s228, 8
          %s230 = scalar_lea.hbm %s1, %s229
          %s231 = sshll.u32 %s230, 4
          %s232 = int_to_ptr.hbm [resolvable:$true] %s231
          %s233 = sshll.u32 %s224, 4
          %s234 = int_to_ptr.vmem [resolvable:$true] %s233
          %239 = dma.hbm_to_vmem [thread:$0]  %s232, 512, %s234, %s221, 128, 128, 8
        $region24: #{tpu_custom_call.1} parent=15 // pred_fallthru
          _
        // Predicated region
        $region25: #{tpu_custom_call.1} parent=15 // pred_check
          %p240 = pneg %p113
        $region26: #{tpu_custom_call.1} parent=15 // pred_check_branch
          %242 = sbr.rel (%p240) target = $region28
        $region27: #{tpu_custom_call.1} parent=15 // pred_region
          %s243 = sand.u32 %s23, 1
          %s244 = scalar_lea.sflag [#allocation6], %s243
          %s245 = sand.u32 %s103, 1
          %s246 = smul.addr %s245, 80
          %s247 = scalar_lea.vmem [#allocation7], %s246
          %249 = vsyncadd %s244, 0
          %s250 = smul.addr %s30, 10
          %s251 = sadd.s32 %s31, %s250
          %s252 = smul.addr %s251, 8
          %s253 = scalar_lea.hbm %s2, %s252
          %s254 = sshll.u32 %s253, 4
          %s255 = int_to_ptr.hbm [resolvable:$true] %s254
          %s256 = sshll.u32 %s247, 4
          %s257 = int_to_ptr.vmem [resolvable:$true] %s256
          %262 = dma.hbm_to_vmem [thread:$0]  %s255, 1280, %s257, %s244, 128, 128, 8
        $region28: #{tpu_custom_call.1} parent=15 // pred_fallthru
          _
      $region16: #{tpu_custom_call.1} parent=5 // pred_fallthru
        _
      %p263 = scmp.le.s32.totalorder 1, %s23
      %p264 = scmp.lt.s32.totalorder %s23, 3
      %p265 = pnand %p263, %p264
      %p266 = pneg %p265
      // Predicated region
      $region29: #{tpu_custom_call.1} parent=5 // pred_check
        _
      $region30: #{tpu_custom_call.1} parent=5 // pred_check_branch
        %268 = sbr.rel (%p265) target = $region32
      $region31: #{tpu_custom_call.1} parent=5 // pred_region
        %s269 = ssub.s32 %s23, 1
        %s270 = sand.u32 %s50, 1
        %s271 = scalar_lea.sflag [#allocation3], %s270
        %s272 = sand.u32 %s50, 1
        %s273 = smul.addr %s272, 32
        %s274 = scalar_lea.vmem [#allocation2], %s273
        // Predicated region
        $region33: #{tpu_custom_call.1} parent=31 // pred_check
          %p275 = pneg %p63
        $region34: #{tpu_custom_call.1} parent=31 // pred_check_branch
          %277 = sbr.rel (%p275) target = $region36
        $region35: #{tpu_custom_call.1} parent=31 // pred_region
          %279 = dma.done %s271, 512
        $region36: #{tpu_custom_call.1} parent=31 // pred_fallthru
          _
        %s280 = sand.u32 %s28, 1
        %s281 = scalar_lea.sflag [#allocation6], %s280
        %s282 = sand.u32 %s78, 1
        %s283 = smul.addr %s282, 32
        %s284 = scalar_lea.vmem [#allocation5], %s283
        // Predicated region
        $region37: #{tpu_custom_call.1} parent=31 // pred_check
          %p285 = pneg %p91
        $region38: #{tpu_custom_call.1} parent=31 // pred_check_branch
          %287 = sbr.rel (%p285) target = $region40
        $region39: #{tpu_custom_call.1} parent=31 // pred_region
          %289 = dma.done %s281, 512
        $region40: #{tpu_custom_call.1} parent=31 // pred_fallthru
          _
        %s290 = sand.u32 %s28, 1
        %s291 = scalar_lea.sflag [#allocation6], %s290
        %s292 = sand.u32 %s106, 1
        %s293 = smul.addr %s292, 80
        %s294 = scalar_lea.vmem [#allocation7], %s293
        // Predicated region
        $region41: #{tpu_custom_call.1} parent=31 // pred_check
          %p295 = pneg %p119
        $region42: #{tpu_custom_call.1} parent=31 // pred_check_branch
          %297 = sbr.rel (%p295) target = $region44
        $region43: #{tpu_custom_call.1} parent=31 // pred_region
          %299 = dma.done %s291, 1280
        $region44: #{tpu_custom_call.1} parent=31 // pred_fallthru
          _
        %s300 = sand.u32 %s50, 1
        %s301 = scalar_lea.sflag [#allocation3], %s300
        %s302 = sand.u32 %s50, 1
        %s303 = smul.addr %s302, 32
        %s304 = scalar_lea.vmem [#allocation2], %s303
        %p305 = pneg %p63
        %p306 = pneg %p60
        %s307 = sand.u32 %s28, 1
        %s308 = scalar_lea.sflag [#allocation6], %s307
        %s309 = sand.u32 %s78, 1
        %s310 = smul.addr %s309, 32
        %s311 = scalar_lea.vmem [#allocation5], %s310
        %p312 = pneg %p91
        %p313 = pneg %p88
        %s314 = sand.u32 %s28, 1
        %s315 = scalar_lea.sflag [#allocation6], %s314
        %s316 = sand.u32 %s106, 1
        %s317 = smul.addr %s316, 80
        %s318 = scalar_lea.vmem [#allocation7], %s317
        %p319 = pneg %p119
        %p320 = pneg %p116
        %p321 = pneg %p147
        %p322 = pneg %p144
        %s323 = sand.u32 %s134, 1
        %s324 = scalar_lea.sflag [#allocation4], %s323
        %s325 = sand.u32 %s134, 1
        %s326 = smul.addr %s325, 32
        %s327 = scalar_lea.vmem [#allocation8], %s326
        %p328 = pneg %p175
        %p329 = pneg %p172
        %s330 = sand.u32 %s162, 1
        %s331 = scalar_lea.sflag [#allocation10], %s330
        %s332 = sand.u32 %s162, 1
        %s333 = smul.addr %s332, 80
        %s334 = scalar_lea.vmem [#allocation9], %s333
        %v335 = vld [vmem:[%s274] sm:$0xff]
        %s336 = sadd.s32 0, 8
        %s337 = scalar_lea.vmem %s274, %s336 [#allocation2]
        %v338 = vld [vmem:[%s337] sm:$0xff]
        %s339 = sadd.s32 0, 16
        %s340 = scalar_lea.vmem %s274, %s339 [#allocation2]
        %v341 = vld [vmem:[%s340] sm:$0xff]
        %s342 = sadd.s32 0, 24
        %s343 = scalar_lea.vmem %s274, %s342 [#allocation2]
        %v344 = vld [vmem:[%s343] sm:$0xff]
        %v345 = vsub.f32 %v341, %v335
        %v346 = vsub.f32 %v344, %v338
        %v347 = vmul.f32 %v345, 0.5
        %v348 = vadd.f32 %v335, %v347
        %v349 = vmul.f32 %v346, 0.5
        %v350 = vadd.f32 %v338, %v349
        %v351 = vmul.f32 %v345, 0.1
        %v352 = vmul.f32 %v346, 0.1
        %v353 = vld [vmem:[%s284] sm:$0xff]
        %s354 = scalar_lea.vmem %s284, %s336 [#allocation5]
        %v355 = vld [vmem:[%s354] sm:$0xff]
        %s356 = scalar_lea.vmem %s284, %s339 [#allocation5]
        %v357 = vld [vmem:[%s356] sm:$0xff]
        %s358 = scalar_lea.vmem %s284, %s342 [#allocation5]
        %v359 = vld [vmem:[%s358] sm:$0xff]
        %v360 = vmul.f32 %v353, %v351
        %v361 = vadd.f32 %v348, %v360
        %v362 = vmul.f32 %v355, %v352
        %v363 = vadd.f32 %v350, %v362
        %v364 = vmul.f32 %v357, 0.2
        %v365 = vmul.f32 %v364, 1.442695
        %v366 = vpow.pop %v365
        %v367 = vmul.f32 %v366, 0.5
        %v368 = vmul.f32 %v367, %v345
        %v369 = vmul.f32 %v359, 0.2
        %v370 = vmul.f32 %v369, 1.442695
        %v371 = vpow.pop %v370
        %v372 = vmul.f32 %v371, 0.5
        %v373 = vmul.f32 %v372, %v346
        %v374 = vsub.f32 %v361, %v368
        %v375 = vmax.f32 %v374, 0.0
        %v376 = vmin.f32 %v375, 16.0
        %377 = vst [vmem:[%s327] sm:$0xff] %v376
        %v378 = vsub.f32 %v363, %v373
        %v379 = vmax.f32 %v378, 0.0
        %v380 = vmin.f32 %v379, 16.0
        %s381 = scalar_lea.vmem %s327, %s336 [#allocation8]
        %382 = vst [vmem:[%s381] sm:$0xff] %v380
        %v383 = vadd.f32 %v361, %v368
        %v384 = vmax.f32 %v383, 0.0
        %v385 = vmin.f32 %v384, 16.0
        %s386 = scalar_lea.vmem %s327, %s339 [#allocation8]
        %387 = vst [vmem:[%s386] sm:$0xff] %v385
        %v388 = vadd.f32 %v363, %v373
        %v389 = vmax.f32 %v388, 0.0
        %v390 = vmin.f32 %v389, 16.0
        %s391 = scalar_lea.vmem %s327, %s342 [#allocation8]
        %392 = vst [vmem:[%s391] sm:$0xff] %v390
        %v393 = vld [vmem:[%s294] sm:$0xff]
        %s394 = scalar_lea.vmem %s294, %s336 [#allocation7]
        %v395 = vld [vmem:[%s394] sm:$0xff]
        %v396 = vmul.f32 %v393, %v351
        %v397 = vadd.f32 %v348, %v396
        %v398 = vmax.f32 %v397, 0.0
        %v399 = vmin.f32 %v398, 16.0
        %400 = vst [vmem:[%s334] sm:$0xff] %v399
        %v401 = vmul.f32 %v395, %v352
        %v402 = vadd.f32 %v350, %v401
        %v403 = vmax.f32 %v402, 0.0
        %v404 = vmin.f32 %v403, 16.0
        %s405 = scalar_lea.vmem %s334, %s336 [#allocation9]
        %406 = vst [vmem:[%s405] sm:$0xff] %v404
        %s407 = scalar_lea.vmem %s294, %s339 [#allocation7]
        %v408 = vld [vmem:[%s407] sm:$0xff]
        %s409 = scalar_lea.vmem %s294, %s342 [#allocation7]
        %v410 = vld [vmem:[%s409] sm:$0xff]
        %v411 = vmul.f32 %v408, %v351
        %v412 = vadd.f32 %v348, %v411
        %v413 = vmax.f32 %v412, 0.0
        %v414 = vmin.f32 %v413, 16.0
        %s415 = scalar_lea.vmem %s334, %s339 [#allocation9]
        %416 = vst [vmem:[%s415] sm:$0xff] %v414
        %v417 = vmul.f32 %v410, %v352
        %v418 = vadd.f32 %v350, %v417
        %v419 = vmax.f32 %v418, 0.0
        %v420 = vmin.f32 %v419, 16.0
        %s421 = scalar_lea.vmem %s334, %s342 [#allocation9]
        %422 = vst [vmem:[%s421] sm:$0xff] %v420
        %s423 = sadd.s32 0, 32
        %s424 = scalar_lea.vmem %s294, %s423 [#allocation7]
        %v425 = vld [vmem:[%s424] sm:$0xff]
        %s426 = sadd.s32 0, 40
        %s427 = scalar_lea.vmem %s294, %s426 [#allocation7]
        %v428 = vld [vmem:[%s427] sm:$0xff]
        %v429 = vmul.f32 %v425, %v351
        %v430 = vadd.f32 %v348, %v429
        %v431 = vmax.f32 %v430, 0.0
        %v432 = vmin.f32 %v431, 16.0
        %s433 = scalar_lea.vmem %s334, %s423 [#allocation9]
        %434 = vst [vmem:[%s433] sm:$0xff] %v432
        %v435 = vmul.f32 %v428, %v352
        %v436 = vadd.f32 %v350, %v435
        %v437 = vmax.f32 %v436, 0.0
        %v438 = vmin.f32 %v437, 16.0
        %s439 = scalar_lea.vmem %s334, %s426 [#allocation9]
        %440 = vst [vmem:[%s439] sm:$0xff] %v438
        %s441 = sadd.s32 0, 48
        %s442 = scalar_lea.vmem %s294, %s441 [#allocation7]
        %v443 = vld [vmem:[%s442] sm:$0xff]
        %s444 = sadd.s32 0, 56
        %s445 = scalar_lea.vmem %s294, %s444 [#allocation7]
        %v446 = vld [vmem:[%s445] sm:$0xff]
        %v447 = vmul.f32 %v443, %v351
        %v448 = vadd.f32 %v348, %v447
        %v449 = vmax.f32 %v448, 0.0
        %v450 = vmin.f32 %v449, 16.0
        %s451 = scalar_lea.vmem %s334, %s441 [#allocation9]
        %452 = vst [vmem:[%s451] sm:$0xff] %v450
        %v453 = vmul.f32 %v446, %v352
        %v454 = vadd.f32 %v350, %v453
        %v455 = vmax.f32 %v454, 0.0
        %v456 = vmin.f32 %v455, 16.0
        %s457 = scalar_lea.vmem %s334, %s444 [#allocation9]
        %458 = vst [vmem:[%s457] sm:$0xff] %v456
        %s459 = sadd.s32 0, 64
        %s460 = scalar_lea.vmem %s294, %s459 [#allocation7]
        %v461 = vld [vmem:[%s460] sm:$0xff]
        %s462 = sadd.s32 0, 72
        %s463 = scalar_lea.vmem %s294, %s462 [#allocation7]
        %v464 = vld [vmem:[%s463] sm:$0xff]
        %v465 = vmul.f32 %v461, %v351
        %v466 = vadd.f32 %v348, %v465
        %v467 = vmax.f32 %v466, 0.0
        %v468 = vmin.f32 %v467, 16.0
        %s469 = scalar_lea.vmem %s334, %s459 [#allocation9]
        %470 = vst [vmem:[%s469] sm:$0xff] %v468
        %v471 = vmul.f32 %v464, %v352
        %v472 = vadd.f32 %v350, %v471
        %v473 = vmax.f32 %v472, 0.0
        %v474 = vmin.f32 %v473, 16.0
        %s475 = scalar_lea.vmem %s334, %s462 [#allocation9]
        %476 = vst [vmem:[%s475] sm:$0xff] %v474
        %s477 = sand.u32 %s134, 1
        %s478 = scalar_lea.sflag [#allocation4], %s477
        %s479 = sand.u32 %s134, 1
        %s480 = smul.addr %s479, 32
        %s481 = scalar_lea.vmem [#allocation8], %s480
        %s482 = sand.u32 %s162, 1
        %s483 = scalar_lea.sflag [#allocation10], %s482
        %s484 = sand.u32 %s162, 1
        %s485 = smul.addr %s484, 80
        %s486 = scalar_lea.vmem [#allocation9], %s485
        // Predicated region
        $region45: #{tpu_custom_call.1} parent=31 // pred_check
          %p487 = pneg %p144
        $region46: #{tpu_custom_call.1} parent=31 // pred_check_branch
          %489 = sbr.rel (%p487) target = $region48
        $region47: #{tpu_custom_call.1} parent=31 // pred_region
          %491 = vsyncadd %s478, 0
          %s492 = smul.addr %s32, 4
          %s493 = sadd.s32 %s33, %s492
          %s494 = smul.addr %s493, 8
          %s495 = scalar_lea.hbm %s3, %s494
          %s496 = sshll.u32 %s481, 4
          %s497 = int_to_ptr.vmem [resolvable:$true] %s496
          %s498 = sshll.u32 %s495, 4
          %s499 = int_to_ptr.hbm [resolvable:$true] %s498
          %504 = dma.vmem_to_hbm [thread:$0]  %s497, 512, %s499, %s478, 128, 128, 8
        $region48: #{tpu_custom_call.1} parent=31 // pred_fallthru
          _
        // Predicated region
        $region49: #{tpu_custom_call.1} parent=31 // pred_check
          %p505 = pneg %p172
        $region50: #{tpu_custom_call.1} parent=31 // pred_check_branch
          %507 = sbr.rel (%p505) target = $region52
        $region51: #{tpu_custom_call.1} parent=31 // pred_region
          %509 = vsyncadd %s483, 0
          %s510 = smul.addr %s32, 10
          %s511 = sadd.s32 %s33, %s510
          %s512 = smul.addr %s511, 8
          %s513 = scalar_lea.hbm %s4, %s512
          %s514 = sshll.u32 %s486, 4
          %s515 = int_to_ptr.vmem [resolvable:$true] %s514
          %s516 = sshll.u32 %s513, 4
          %s517 = int_to_ptr.hbm [resolvable:$true] %s516
          %522 = dma.vmem_to_hbm [thread:$0]  %s515, 1280, %s517, %s483, 128, 128, 8
        $region52: #{tpu_custom_call.1} parent=31 // pred_fallthru
          _
      $region32: #{tpu_custom_call.1} parent=5 // pred_fallthru
        _
      %p523 = scmp.le.s32.totalorder 2, %s23
      // Predicated region
      $region53: #{tpu_custom_call.1} parent=5 // pred_check
        %p524 = pneg %p523
      $region54: #{tpu_custom_call.1} parent=5 // pred_check_branch
        %526 = sbr.rel (%p524) target = $region56
      $region55: #{tpu_custom_call.1} parent=5 // pred_region
        %s527 = ssub.s32 %s23, 2
        // Predicated region
        $region57: #{tpu_custom_call.1} parent=55 // pred_check
          %p528 = pneg %p150
        $region58: #{tpu_custom_call.1} parent=55 // pred_check_branch
          %530 = sbr.rel (%p528) target = $region60
        $region59: #{tpu_custom_call.1} parent=55 // pred_region
          %s531 = sand.u32 %s135, 1
          %s532 = scalar_lea.sflag [#allocation4], %s531
          %s533 = sand.u32 %s135, 1
          %s534 = smul.addr %s533, 32
          %s535 = scalar_lea.vmem [#allocation8], %s534
          %537 = dma.done %s532, 512
        $region60: #{tpu_custom_call.1} parent=55 // pred_fallthru
          _
        // Predicated region
        $region61: #{tpu_custom_call.1} parent=55 // pred_check
          %p538 = pneg %p178
        $region62: #{tpu_custom_call.1} parent=55 // pred_check_branch
          %540 = sbr.rel (%p538) target = $region64
        $region63: #{tpu_custom_call.1} parent=55 // pred_region
          %s541 = sand.u32 %s163, 1
          %s542 = scalar_lea.sflag [#allocation10], %s541
          %s543 = sand.u32 %s163, 1
          %s544 = smul.addr %s543, 80
          %s545 = scalar_lea.vmem [#allocation9], %s544
          %547 = dma.done %s542, 1280
        $region64: #{tpu_custom_call.1} parent=55 // pred_fallthru
          _
      $region56: #{tpu_custom_call.1} parent=5 // pred_fallthru
        _
    $region6: #{tpu_custom_call.1} parent=1 // loop_footer
      %s27 = sadd.s32 1, %s23
    $region7: #{tpu_custom_call.1} parent=1 // loop_footer_branch
      %22 = sbr.rel target = $region3
    $region8: #{tpu_custom_call.1} parent=1 // loop_exit
      _
    %548 = vsyncpa [#allocation3], 1
    %s549 = scalar_lea.sflag [#allocation3], 1
    %550 = vsyncpa %s549, 1
    %551 = vsyncpa [#allocation6], 1
    %s552 = scalar_lea.sflag [#allocation6], 1
    %553 = vsyncpa %s552, 1
    %554 = vsyncpa [#allocation4], 1
    %s555 = scalar_lea.sflag [#allocation4], 1
    %556 = vsyncpa %s555, 1
    %557 = vsyncpa [#allocation10], 1
    %s558 = scalar_lea.sflag [#allocation10], 1
    %559 = vsyncpa %s558, 1

</llo_original>
